<compile_context>
chip_gen: v7x
topology: tpu7x:2x2x1
jax: 0.10.0
libtpu: 0.0.40
codegen_flags: <defaults>
</compile_context>

<pallas_src>
import functools

import jax
import jax.numpy as jnp
from jax.experimental import pallas as pl
from jax.experimental.pallas import tpu as pltpu

EPS = 1e-8        # VecLayerNorm epsilon (as in the PyTorch source)
LN_EPS = 1e-5     # torch.nn.LayerNorm default eps


def _gvnorm_kernel(buf_ref, w_ref, b_ref, gb_ref, out_ref, *, h_dim, v_dim):
    # buf is the lane-dense (tile_n, H + V*H) slab: [:, :H] = sca, [:, H:] = vec (flattened).
    buf = buf_ref[...].astype(jnp.float32)
    x = buf[:, :h_dim]
    v = buf[:, h_dim:]

    # ---- scalar-channel LayerNorm over H (one-pass moments) ----
    inv_h = 1.0 / h_dim
    s1 = jnp.sum(x, axis=-1, keepdims=True)
    s2 = jnp.sum(x * x, axis=-1, keepdims=True)
    mean = s1 * inv_h
    var = jnp.maximum(s2 * inv_h - mean * mean, 0.0)        # biased variance (torch LN)
    y = (x - mean) * jax.lax.rsqrt(var + LN_EPS)
    y = y * w_ref[...].astype(jnp.float32) + b_ref[...].astype(jnp.float32)

    # ---- vector-channel VecLayerNorm ----
    # PyTorch's sum over dim=-1 then dim=-2 equals one sum over all V*H elements per row.
    sq = jnp.sum(v * v, axis=-1, keepdims=True)             # (tile_n, 1)
    inv_denom = jax.lax.rsqrt((sq + EPS) / v_dim)           # 1 / sqrt((sum + EPS) / V)
    gamma = gb_ref[0]
    beta = gb_ref[1]
    # non_zero_mask omitted: for v == 0, v * inv_denom == 0 exactly (inv_denom finite > 0).
    vout = v * inv_denom * gamma + beta

    # single lane-dense (128-lane for H=32, V=3) store of both results
    out_ref[...] = jnp.concatenate([y, vout], axis=-1).astype(out_ref.dtype)


def _pick_tile_n(n, bytes_per_row, target_bytes=4 << 20):
    """Bytes-targeted tile: ~4 MiB of input per grid step, multiple of 8, >=2 grid steps."""
    t = max(8, (target_bytes // max(bytes_per_row, 1)) // 8 * 8)
    # keep at least 2 grid steps so dimension_semantics=("parallel",) actually shards
    # rows across both TensorCores on v7x (harmless on single-TC v5e/v6e)
    half = max(8, (-(-((n + 1) // 2) // 8)) * 8)
    t = min(t, half)
    n_pad8 = (-(-n // 8)) * 8
    return max(8, min(t, n_pad8))


def gv_norm_fused(fused, ln_weight, ln_bias, gamma, beta, h_dim, v_dim, *, tile_n=None):
    """Core kernel on the fused [N, H + V*H] slab (preferred layout for downstream fusion)."""
    N, D = fused.shape
    assert D == h_dim + v_dim * h_dim
    itemsize = jnp.dtype(fused.dtype).itemsize

    if tile_n is None:
        tile_n = _pick_tile_n(N, D * itemsize)
    tile_n = max(8, (tile_n // 8) * 8)

    # pad rows to a multiple of tile_n (rows are independent; zero rows are benign)
    n_pad = (-(-N // tile_n)) * tile_n
    if n_pad != N:
        fused = jnp.pad(fused, ((0, n_pad - N), (0, 0)))
    grid = (pl.cdiv(n_pad, tile_n),)

    gb = jnp.stack([jnp.reshape(gamma, ()), jnp.reshape(beta, ())]).astype(jnp.float32)

    cost = pl.CostEstimate(
        flops=8 * n_pad * D,                       # elementwise norm math (rough)
        transcendentals=2 * n_pad,                 # two rsqrt per row
        bytes_accessed=2 * n_pad * D * itemsize,   # pure streaming: read + write the slab
    )

    kernel = functools.partial(_gvnorm_kernel, h_dim=h_dim, v_dim=v_dim)

    out = pl.pallas_call(
        kernel,
        out_shape=jax.ShapeDtypeStruct((n_pad, D), fused.dtype),
        grid=grid,
        in_specs=[
            pl.BlockSpec((tile_n, D), lambda i: (i, 0)),
            pl.BlockSpec((1, h_dim), lambda i: (0, 0)),
            pl.BlockSpec((1, h_dim), lambda i: (0, 0)),
            pl.BlockSpec(memory_space=pltpu.MemorySpace.SMEM),   # [gamma, beta]
        ],
        out_specs=pl.BlockSpec((tile_n, D), lambda i: (i, 0)),
        compiler_params=pltpu.CompilerParams(
            dimension_semantics=("parallel",),      # rows are independent -> megacore on v7x
            vmem_limit_bytes=32 * 1024 * 1024,      # safe on v7x (64 MiB physical VMEM)
        ),
        cost_estimate=cost,
    )(fused, ln_weight.reshape(1, h_dim), ln_bias.reshape(1, h_dim), gb)

    if n_pad != N:
        out = out[:N]
    return out


def gv_norm(sca, vec, ln_weight, ln_bias, gamma, beta, *, tile_n=None):
    """Drop-in (sca, vec) interface matching the PyTorch GVNorm forward."""
    N, H = sca.shape
    Nv, V, Hv = vec.shape
    assert N == Nv and H == Hv
    # NOTE: for best performance keep activations in the fused [N, H + V*H] layout and call
    # gv_norm_fused directly; the concat/split below add an HBM pass unless XLA fuses them
    # with the producer/consumer.
    fused = jnp.concatenate([sca, vec.reshape(N, V * H)], axis=-1)
    out = gv_norm_fused(fused, ln_weight, ln_bias, gamma, beta, H, V, tile_n=tile_n)
    sca_out = out[:, :H]
    vec_out = out[:, H:].reshape(N, V, H)
    return sca_out, vec_out


def _reference(sca, vec, ln_weight, ln_bias, gamma, beta):
    # plain-JAX reference of the PyTorch forward (mask kept, as in the source)
    x = sca.astype(jnp.float32)
    mean = jnp.mean(x, axis=-1, keepdims=True)
    var = jnp.mean((x - mean) ** 2, axis=-1, keepdims=True)
    sca_ref = (x - mean) / jnp.sqrt(var + LN_EPS) * ln_weight + ln_bias

    v = vec.astype(jnp.float32)
    mask = (v != 0).astype(v.dtype)
    denom = jnp.sqrt(
        (jnp.sum(jnp.sum(v ** 2, axis=-1, keepdims=True), axis=-2, keepdims=True) + EPS)
        / v.shape[-2]
    )
    vec_ref = v / denom * mask
    vec_ref = vec_ref * gamma + beta
    return sca_ref, vec_ref


if __name__ == "__main__":
    key = jax.random.PRNGKey(0)
    N, V, H = 256, 3, 32  # N nodes, 3 spatial components, sca_hidden = 32

    k1, k2 = jax.random.split(key)
    sca = jax.random.normal(k1, (N, H), dtype=jnp.float32)
    vec = jax.random.normal(k2, (N, V, H), dtype=jnp.float32)
    # sprinkle in some exact zeros so the (dropped) non_zero_mask path is covered
    vec = vec.at[0, 0, :].set(0.0)

    # deterministic parameters (module __init__ defaults)
    ln_weight = jnp.ones((H,), dtype=jnp.float32)
    ln_bias = jnp.zeros((H,), dtype=jnp.float32)
    gamma = jnp.ones((1,), dtype=jnp.float32)
    beta = jnp.zeros((1,), dtype=jnp.float32)

    # auto tile pick -> tile_n=128, grid=(2,): exercises pipelining + both TCs on v7x
    sca_out, vec_out = gv_norm(sca, vec, ln_weight, ln_bias, gamma, beta)
    jax.block_until_ready((sca_out, vec_out))

    sca_ref, vec_ref = _reference(sca, vec, ln_weight, ln_bias, gamma, beta)
    assert jnp.allclose(sca_out, sca_ref, atol=1e-5, rtol=1e-5)
    assert jnp.allclose(vec_out, vec_ref, atol=1e-5, rtol=1e-5)

    print("KERNEL_OK")
</pallas_src>

<mosaic_0001>
module attributes {stable_mosaic.version = 11 : i64} {
  func.func @_gvnorm_kernel(%arg0: i32, %arg1: memref<128x128xf32, #tpu.memory_space<vmem>>, %arg2: memref<1x32xf32, #tpu.memory_space<vmem>>, %arg3: memref<1x32xf32, #tpu.memory_space<vmem>>, %arg4: memref<2xf32, #tpu.memory_space<smem>>, %arg5: memref<128x128xf32, #tpu.memory_space<vmem>>) attributes {dimension_semantics = [#tpu.dimension_semantics<parallel>], iteration_bounds = array<i64: 2>, scalar_prefetch = 0 : i64, scratch_operands = 0 : i64, tpu.core_type = #tpu.core_type<tc>, window_params = [{transform_indices = @transform_0, window_bounds = array<i64: 128, 128>}, {pipeline_mode = #tpu.pipeline_mode<synchronous>, transform_indices = @transform_1, window_bounds = array<i64: 1, 32>}, {pipeline_mode = #tpu.pipeline_mode<synchronous>, transform_indices = @transform_2, window_bounds = array<i64: 1, 32>}, {transform_indices = @transform_3, window_bounds = array<i64: 2>}, {transform_indices = @transform_4, window_bounds = array<i64: 128, 128>}]} {
    %c0 = arith.constant 0 : index
    %c0_0 = arith.constant 0 : index
    %0 = vector.load %arg1[%c0, %c0_0] : memref<128x128xf32, #tpu.memory_space<vmem>>, vector<128x128xf32>
    %1 = vector.extract_strided_slice %0 {offsets = [0, 0], sizes = [128, 32], strides = [1, 1]} : vector<128x128xf32> to vector<128x32xf32>
    %2 = vector.extract_strided_slice %0 {offsets = [0, 32], sizes = [128, 96], strides = [1, 1]} : vector<128x128xf32> to vector<128x96xf32>
    %cst = arith.constant dense<0.000000e+00> : vector<128xf32>
    %3 = vector.multi_reduction <add>, %1, %cst [1] : vector<128x32xf32> to vector<128xf32>
    %4 = vector.shape_cast %3 : vector<128xf32> to vector<128x1xf32>
    %5 = arith.mulf %1, %1 : vector<128x32xf32>
    %cst_1 = arith.constant dense<0.000000e+00> : vector<128xf32>
    %6 = vector.multi_reduction <add>, %5, %cst_1 [1] : vector<128x32xf32> to vector<128xf32>
    %7 = vector.shape_cast %6 : vector<128xf32> to vector<128x1xf32>
    %cst_2 = arith.constant 3.125000e-02 : f32
    %8 = vector.broadcast %cst_2 : f32 to vector<128x1xf32>
    %9 = arith.mulf %4, %8 : vector<128x1xf32>
    %cst_3 = arith.constant 3.125000e-02 : f32
    %10 = vector.broadcast %cst_3 : f32 to vector<128x1xf32>
    %11 = arith.mulf %7, %10 : vector<128x1xf32>
    %12 = arith.mulf %9, %9 : vector<128x1xf32>
    %13 = arith.subf %11, %12 : vector<128x1xf32>
    %cst_4 = arith.constant 0.000000e+00 : f32
    %14 = vector.broadcast %cst_4 : f32 to vector<128x1xf32>
    %15 = arith.maximumf %13, %14 : vector<128x1xf32>
    %16 = vector.broadcast %9 : vector<128x1xf32> to vector<128x32xf32>
    %17 = arith.subf %1, %16 : vector<128x32xf32>
    %cst_5 = arith.constant 9.99999974E-6 : f32
    %18 = vector.broadcast %cst_5 : f32 to vector<128x1xf32>
    %19 = arith.addf %15, %18 : vector<128x1xf32>
    %20 = math.rsqrt %19 : vector<128x1xf32>
    %21 = vector.broadcast %20 : vector<128x1xf32> to vector<128x32xf32>
    %22 = arith.mulf %17, %21 : vector<128x32xf32>
    %c0_6 = arith.constant 0 : index
    %c0_7 = arith.constant 0 : index
    %23 = vector.load %arg2[%c0_6, %c0_7] : memref<1x32xf32, #tpu.memory_space<vmem>>, vector<1x32xf32>
    %24 = vector.broadcast %23 : vector<1x32xf32> to vector<128x32xf32>
    %25 = arith.mulf %22, %24 : vector<128x32xf32>
    %c0_8 = arith.constant 0 : index
    %c0_9 = arith.constant 0 : index
    %26 = vector.load %arg3[%c0_8, %c0_9] : memref<1x32xf32, #tpu.memory_space<vmem>>, vector<1x32xf32>
    %27 = vector.broadcast %26 : vector<1x32xf32> to vector<128x32xf32>
    %28 = arith.addf %25, %27 : vector<128x32xf32>
    %29 = arith.mulf %2, %2 : vector<128x96xf32>
    %cst_10 = arith.constant dense<0.000000e+00> : vector<128xf32>
    %30 = vector.multi_reduction <add>, %29, %cst_10 [1] : vector<128x96xf32> to vector<128xf32>
    %31 = vector.shape_cast %30 : vector<128xf32> to vector<128x1xf32>
    %cst_11 = arith.constant 9.99999993E-9 : f32
    %32 = vector.broadcast %cst_11 : f32 to vector<128x1xf32>
    %33 = arith.addf %31, %32 : vector<128x1xf32>
    %cst_12 = arith.constant 3.000000e+00 : f32
    %34 = vector.broadcast %cst_12 : f32 to vector<128x1xf32>
    %35 = arith.divf %33, %34 : vector<128x1xf32>
    %36 = math.rsqrt %35 : vector<128x1xf32>
    %c0_13 = arith.constant 0 : index
    %37 = memref.load %arg4[%c0_13] : memref<2xf32, #tpu.memory_space<smem>>
    %c1 = arith.constant 1 : index
    %38 = memref.load %arg4[%c1] : memref<2xf32, #tpu.memory_space<smem>>
    %39 = vector.broadcast %36 : vector<128x1xf32> to vector<128x96xf32>
    %40 = arith.mulf %2, %39 : vector<128x96xf32>
    %41 = vector.broadcast %37 : f32 to vector<128x96xf32>
    %42 = arith.mulf %40, %41 : vector<128x96xf32>
    %43 = vector.broadcast %38 : f32 to vector<128x96xf32>
    %44 = arith.addf %42, %43 : vector<128x96xf32>
    %45 = tpu.concatenate %28, %44 in 1 : vector<128x32xf32>, vector<128x96xf32> -> vector<128x128xf32>
    %c0_14 = arith.constant 0 : index
    %c0_15 = arith.constant 0 : index
    %46 = vector.load %arg5[%c0_14, %c0_15] : memref<128x128xf32, #tpu.memory_space<vmem>>, vector<128x128xf32>
    tpu.vector_store %arg5[%c0_14, %c0_15], %45 {strides = array<i32>} : memref<128x128xf32, #tpu.memory_space<vmem>>, vector<128x128xf32>,
    return
  }
  func.func @transform_0(%arg0: i32) -> (i32, i32) {
    %c0_i32 = arith.constant 0 : i32
    %c0_i32_0 = arith.constant 0 : i32
    return %arg0, %c0_i32 : i32, i32
  }
  func.func @transform_1(%arg0: i32) -> (i32, i32) {
    %c0_i32 = arith.constant 0 : i32
    %c0_i32_0 = arith.constant 0 : i32
    %c0_i32_1 = arith.constant 0 : i32
    return %c0_i32, %c0_i32_0 : i32, i32
  }
  func.func @transform_2(%arg0: i32) -> (i32, i32) {
    %c0_i32 = arith.constant 0 : i32
    %c0_i32_0 = arith.constant 0 : i32
    %c0_i32_1 = arith.constant 0 : i32
    return %c0_i32, %c0_i32_0 : i32, i32
  }
  func.func @transform_3(%arg0: i32) -> i32 {
    %c0_i32 = arith.constant 0 : i32
    %c0_i32_0 = arith.constant 0 : i32
    return %c0_i32 : i32
  }
  func.func @transform_4(%arg0: i32) -> (i32, i32) {
    %c0_i32 = arith.constant 0 : i32
    %c0_i32_0 = arith.constant 0 : i32
    return %arg0, %c0_i32 : i32, i32
  }
}

</mosaic_0001>

<llo_original>
// kernel: tpu_custom_call.1
$region0: #{tpu_custom_call.1}
  #allocation0 [shape = 'u32[]', space=smem, size = 0x4, offset = 0x4, fixed_abs, tag = 'smem constant byte address 0x4 - core index']
  #allocation1 [shape = 'u32[144,128]{1,0:T(1,128)}', space=vmem, size = 0x12000, scoped, tag = 'internal scratch']
  %s0 = inlined_call_operand.hbm [shape: f32[256,128], index: 0, kind: input, shape index: {}]
  %s1 = inlined_call_operand.vmem [shape: f32[1,32], index: 1, kind: input, shape index: {}]
  %s2 = inlined_call_operand.vmem [shape: f32[1,32], index: 2, kind: input, shape index: {}]
  %s3 = inlined_call_operand.vmem [shape: f32[2], index: 3, kind: input, shape index: {}]
  %s4 = inlined_call_operand.hbm [shape: f32[256,128], index: 4, kind: output, shape index: {}]
  %s5 = sld [smem:[#allocation0]]
  $region57: #{tpu_custom_call.1} parent=0
    _
  %s7 = ssub.s32 1, %s5
  %s8 = scalar_select 0, %s7, %s5
  $region1: #{tpu_custom_call.1} parent=0
    #allocation2 [shape = 'u8[131072]{0}', space=vmem, size = 0x20000, scoped, tag = 'input window, operand 0']
    #allocation3 [shape = 's32[2]{0}', space=sflag, size = 0x8, scoped, tag = 'scoped memory for tpu_custom_call.1']
    #allocation4 [shape = 's32[2]{0}', space=sflag, size = 0x8, scoped, tag = 'scoped memory for tpu_custom_call.1']
    #allocation5 [shape = 's32[2]{0}', space=sflag, size = 0x8, scoped, tag = 'scoped memory for tpu_custom_call.1']
    #allocation6 [shape = 'u8[512]{0}', space=smem, size = 0x200, scoped, tag = 'input window, operand 3, single buffered']
    #allocation7 [shape = 'u8[131072]{0}', space=vmem, size = 0x20000, scoped, tag = 'output window, operand 0']
    %9 = vsyncpa [#allocation3], 0
    %s10 = scalar_lea.sflag [#allocation3], 1
    %11 = vsyncpa %s10, 0
    %12 = vsyncpa [#allocation5], 0
    %13 = vsyncpa [#allocation4], 0
    %s14 = scalar_lea.sflag [#allocation4], 1
    %15 = vsyncpa %s14, 0
    loop: start=0, step=1, limit=4
    $region2: #{tpu_custom_call.1} parent=1 // loop_pre_header
      _
    $region3: #{tpu_custom_call.1} parent=1 // loop_header
      %s17 = sphi 0, %s21
      %p18 = scmp.ge.s32.totalorder %s17, 4
      %s27 = sphi 0, %s29
      %s30 = sphi 0, %s27
      %s31 = sphi 0, %s30
      %s47 = sphi 0, %s31
      %s51 = sphi 0, %s51
      %s53 = sphi 0, %s51
      %s54 = sphi 0, %s53
      %s68 = sphi 0, %s54
      %s72 = sphi 0, %s72
      %s74 = sphi 0, %s72
      %s75 = sphi 0, %s74
      %s89 = sphi 0, %s75
      %s93 = sphi 0, %s93
      %s95 = sphi 0, %s93
      %s96 = sphi 0, %s95
      %s110 = sphi 0, %s96
      %s116 = sphi 0, %s118
      %s119 = sphi 0, %s116
      %s120 = sphi 0, %s119
      %s136 = sphi 0, %s120
    $region4: #{tpu_custom_call.1} parent=1 // loop_header_branch
      %20 = sbr.rel (%p18) target = $region8
    $region5: #{tpu_custom_call.1} parent=1 // loop_body
      %s22 = ssub.s32 %s17, 1
      %s23 = ssub.s32 %s17, 2
      %s24 = sadd.s32 %s17, 1
      %s25 = ssub.s32 %s17, %s24
      %p26 = scmp.eq.s32.totalorder %s25, 0
      %s28 = sadd.s32 %s27, 1
      %s29 = scalar_select %p26, %s27, %s28
      %p32 = pneg %p26
      %p33 = scmp.eq.s32.totalorder %s17, 1
      %p34 = por %p32, %p33
      %p35 = scmp.ne.s32.totalorder %s27, %s30
      %p36 = scmp.eq.s32.totalorder %s17, 0
      %p37 = por %p35, %p36
      %p38 = scmp.ne.s32.totalorder %s27, %s30
      %p39 = scmp.eq.s32.totalorder %s22, 1
      %p40 = por %p38, %p39
      %p41 = scmp.ne.s32.totalorder %s30, %s31
      %p42 = scmp.eq.s32.totalorder %s22, 0
      %p43 = por %p41, %p42
      %p44 = scmp.ne.s32.totalorder %s30, %s31
      %p45 = scmp.eq.s32.totalorder %s23, 1
      %p46 = por %p44, %p45
      %p48 = scmp.ne.s32.totalorder %s31, %s47
      %p49 = scmp.eq.s32.totalorder %s23, 0
      %p50 = por %p48, %p49
      %s52 = sadd.s32 %s51, 1
      %p55 = scmp.eq.s32.totalorder %s17, 1
      %p56 = scmp.ne.s32.totalorder %s51, %s53
      %p57 = scmp.eq.s32.totalorder %s17, 0
      %p58 = por %p56, %p57
      %p59 = scmp.ne.s32.totalorder %s51, %s53
      %p60 = scmp.eq.s32.totalorder %s22, 1
      %p61 = por %p59, %p60
      %p62 = scmp.ne.s32.totalorder %s53, %s54
      %p63 = scmp.eq.s32.totalorder %s22, 0
      %p64 = por %p62, %p63
      %p65 = scmp.ne.s32.totalorder %s53, %s54
      %p66 = scmp.eq.s32.totalorder %s23, 1
      %p67 = por %p65, %p66
      %p69 = scmp.ne.s32.totalorder %s54, %s68
      %p70 = scmp.eq.s32.totalorder %s23, 0
      %p71 = por %p69, %p70
      %s73 = sadd.s32 %s72, 1
      %p76 = scmp.eq.s32.totalorder %s17, 1
      %p77 = scmp.ne.s32.totalorder %s72, %s74
      %p78 = scmp.eq.s32.totalorder %s17, 0
      %p79 = por %p77, %p78
      %p80 = scmp.ne.s32.totalorder %s72, %s74
      %p81 = scmp.eq.s32.totalorder %s22, 1
      %p82 = por %p80, %p81
      %p83 = scmp.ne.s32.totalorder %s74, %s75
      %p84 = scmp.eq.s32.totalorder %s22, 0
      %p85 = por %p83, %p84
      %p86 = scmp.ne.s32.totalorder %s74, %s75
      %p87 = scmp.eq.s32.totalorder %s23, 1
      %p88 = por %p86, %p87
      %p90 = scmp.ne.s32.totalorder %s75, %s89
      %p91 = scmp.eq.s32.totalorder %s23, 0
      %p92 = por %p90, %p91
      %s94 = sadd.s32 %s93, 1
      %p97 = scmp.eq.s32.totalorder %s17, 1
      %p98 = scmp.ne.s32.totalorder %s93, %s95
      %p99 = scmp.eq.s32.totalorder %s17, 0
      %p100 = por %p98, %p99
      %p101 = scmp.ne.s32.totalorder %s93, %s95
      %p102 = scmp.eq.s32.totalorder %s22, 1
      %p103 = por %p101, %p102
      %p104 = scmp.ne.s32.totalorder %s95, %s96
      %p105 = scmp.eq.s32.totalorder %s22, 0
      %p106 = por %p104, %p105
      %p107 = scmp.ne.s32.totalorder %s95, %s96
      %p108 = scmp.eq.s32.totalorder %s23, 1
      %p109 = por %p107, %p108
      %p111 = scmp.ne.s32.totalorder %s96, %s110
      %p112 = scmp.eq.s32.totalorder %s23, 0
      %p113 = por %p111, %p112
      %s114 = ssub.s32 %s17, %s24
      %p115 = scmp.eq.s32.totalorder %s114, 0
      %s117 = sadd.s32 %s116, 1
      %s118 = scalar_select %p115, %s116, %s117
      %p121 = pneg %p115
      %p122 = scmp.eq.s32.totalorder %s17, 1
      %p123 = por %p121, %p122
      %p124 = scmp.ne.s32.totalorder %s116, %s119
      %p125 = scmp.eq.s32.totalorder %s17, 0
      %p126 = por %p124, %p125
      %p127 = scmp.ne.s32.totalorder %s116, %s119
      %p128 = scmp.eq.s32.totalorder %s22, 1
      %p129 = por %p127, %p128
      %p130 = scmp.ne.s32.totalorder %s119, %s120
      %p131 = scmp.eq.s32.totalorder %s22, 0
      %p132 = por %p130, %p131
      %p133 = scmp.ne.s32.totalorder %s119, %s120
      %p134 = scmp.eq.s32.totalorder %s23, 1
      %p135 = por %p133, %p134
      %p137 = scmp.ne.s32.totalorder %s120, %s136
      %p138 = scmp.eq.s32.totalorder %s23, 0
      %p139 = por %p137, %p138
      %p140 = scmp.le.s32.totalorder 1, %s17
      %p141 = scmp.lt.s32.totalorder %s17, 3
      %p142 = pnand %p140, %p141
      %p143 = pneg %p142
      // Predicated region
      $region9: #{tpu_custom_call.1} parent=5 // pred_check
        _
      $region10: #{tpu_custom_call.1} parent=5 // pred_check_branch
        %145 = sbr.rel (%p142) target = $region12
      $region11: #{tpu_custom_call.1} parent=5 // pred_region
        %s146 = ssub.s32 %s17, 1
        // Predicated region
        $region13: #{tpu_custom_call.1} parent=11 // pred_check
          %p147 = pneg %p64
        $region14: #{tpu_custom_call.1} parent=11 // pred_check_branch
          %149 = sbr.rel (%p147) target = $region16
        $region15: #{tpu_custom_call.1} parent=11 // pred_region
          _
        $region16: #{tpu_custom_call.1} parent=11 // pred_fallthru
          _
        // Predicated region
        $region17: #{tpu_custom_call.1} parent=11 // pred_check
          %p150 = pneg %p85
        $region18: #{tpu_custom_call.1} parent=11 // pred_check_branch
          %152 = sbr.rel (%p150) target = $region20
        $region19: #{tpu_custom_call.1} parent=11 // pred_region
          _
        $region20: #{tpu_custom_call.1} parent=11 // pred_fallthru
          _
        // Predicated region
        $region21: #{tpu_custom_call.1} parent=11 // pred_check
          %p153 = pneg %p106
        $region22: #{tpu_custom_call.1} parent=11 // pred_check_branch
          %155 = sbr.rel (%p153) target = $region24
        $region23: #{tpu_custom_call.1} parent=11 // pred_region
          %s157 = ssub.s32 16, 16
          %158 = vsyncadd [#allocation5], %s157
          %s160 = sshll.u32 %s3, 4
          %s161 = int_to_ptr.vmem [resolvable:$true] %s160
          %163 = dma.vmem_to_smem %s161, 16, [#allocation6], [#allocation5]
        $region24: #{tpu_custom_call.1} parent=11 // pred_fallthru
          _
      $region12: #{tpu_custom_call.1} parent=5 // pred_fallthru
        _
      %p164 = scmp.lt.s32.totalorder %s17, 2
      // Predicated region
      $region25: #{tpu_custom_call.1} parent=5 // pred_check
        %p165 = pneg %p164
      $region26: #{tpu_custom_call.1} parent=5 // pred_check_branch
        %167 = sbr.rel (%p165) target = $region28
      $region27: #{tpu_custom_call.1} parent=5 // pred_region
        // Predicated region
        $region29: #{tpu_custom_call.1} parent=27 // pred_check
          %p168 = pneg %p37
        $region30: #{tpu_custom_call.1} parent=27 // pred_check_branch
          %170 = sbr.rel (%p168) target = $region32
        $region31: #{tpu_custom_call.1} parent=27 // pred_region
          %s171 = sand.u32 %s27, 1
          %s172 = scalar_lea.sflag [#allocation3], %s171
          %s173 = sand.u32 %s27, 1
          %s174 = smul.addr %s173, 128
          %s175 = scalar_lea.vmem [#allocation2], %s174
          %s176 = smul.u32 16, %s17
          %s178 = ssub.s32 2048, 2048
          %179 = vsyncadd %s172, %s178
          %s180 = smul.addr %s176, 128
          %s181 = scalar_lea.hbm %s0, %s180
          %s182 = sshll.u32 %s175, 4
          %s183 = int_to_ptr.vmem [resolvable:$true] %s182
          %188 = dma.hbm_to_vmem [thread:$0]  %s181, 2048, %s183, %s172, 128, 128, 8
        $region32: #{tpu_custom_call.1} parent=27 // pred_fallthru
          _
      $region28: #{tpu_custom_call.1} parent=5 // pred_fallthru
        _
      %p189 = scmp.le.s32.totalorder 1, %s17
      %p190 = scmp.lt.s32.totalorder %s17, 3
      %p191 = pnand %p189, %p190
      %p192 = pneg %p191
      // Predicated region
      $region33: #{tpu_custom_call.1} parent=5 // pred_check
        _
      $region34: #{tpu_custom_call.1} parent=5 // pred_check_branch
        %194 = sbr.rel (%p191) target = $region36
      $region35: #{tpu_custom_call.1} parent=5 // pred_region
        %s195 = ssub.s32 %s17, 1
        %s196 = sand.u32 %s30, 1
        %s197 = scalar_lea.sflag [#allocation3], %s196
        %s198 = sand.u32 %s30, 1
        %s199 = smul.addr %s198, 128
        %s200 = scalar_lea.vmem [#allocation2], %s199
        // Predicated region
        $region37: #{tpu_custom_call.1} parent=35 // pred_check
          %p201 = pneg %p43
        $region38: #{tpu_custom_call.1} parent=35 // pred_check_branch
          %203 = sbr.rel (%p201) target = $region40
        $region39: #{tpu_custom_call.1} parent=35 // pred_region
          %204 = dma.done %s197, 2048
        $region40: #{tpu_custom_call.1} parent=35 // pred_fallthru
          _
        // Predicated region
        $region41: #{tpu_custom_call.1} parent=35 // pred_check
          %p205 = pneg %p106
        $region42: #{tpu_custom_call.1} parent=35 // pred_check_branch
          %207 = sbr.rel (%p205) target = $region44
        $region43: #{tpu_custom_call.1} parent=35 // pred_region
          %208 = dma.done [#allocation5], 16
        $region44: #{tpu_custom_call.1} parent=35 // pred_fallthru
          _
        %209 = sfence
        %s210 = sand.u32 %s30, 1
        %s211 = scalar_lea.sflag [#allocation3], %s210
        %s212 = sand.u32 %s30, 1
        %s213 = smul.addr %s212, 128
        %s214 = scalar_lea.vmem [#allocation2], %s213
        %p215 = pneg %p43
        %p216 = pneg %p40
        %p217 = pneg %p64
        %p218 = pneg %p61
        %p219 = pneg %p85
        %p220 = pneg %p82
        %p221 = pneg %p106
        %p222 = pneg %p103
        %p223 = pneg %p132
        %p224 = pneg %p129
        %s225 = sand.u32 %s119, 1
        %s226 = scalar_lea.sflag [#allocation4], %s225
        %s227 = sand.u32 %s119, 1
        %s228 = smul.addr %s227, 128
        %s229 = scalar_lea.vmem [#allocation7], %s228
        %s230 = smul.u32 16, %s22
        %s231 = smul.u32 16, %s22
        %v232 = vld [vmem:[%s200] sm:$0xff]
        %v233 = vld [vmem:[%s200 + $0x8] sm:$0xff]
        %v234 = vld [vmem:[%s200 + $0x10] sm:$0xff]
        %v235 = vld [vmem:[%s200 + $0x18] sm:$0xff]
        %v236 = vld [vmem:[%s200 + $0x20] sm:$0xff]
        %v237 = vld [vmem:[%s200 + $0x28] sm:$0xff]
        %v238 = vld [vmem:[%s200 + $0x30] sm:$0xff]
        %v239 = vld [vmem:[%s200 + $0x38] sm:$0xff]
        %v240 = vld [vmem:[%s200 + $0x40] sm:$0xff]
        %v241 = vld [vmem:[%s200 + $0x48] sm:$0xff]
        %v242 = vld [vmem:[%s200 + $0x50] sm:$0xff]
        %v243 = vld [vmem:[%s200 + $0x58] sm:$0xff]
        %v244 = vld [vmem:[%s200 + $0x60] sm:$0xff]
        %v245 = vld [vmem:[%s200 + $0x68] sm:$0xff]
        %v246 = vld [vmem:[%s200 + $0x70] sm:$0xff]
        %v247 = vld [vmem:[%s200 + $0x78] sm:$0xff]
        %vm248 = vcmask 261120
        %v249 = vsel %vm248, %v232, 0.0
        %250 = vadd.xlane.f32.xlu0 %v249
        %v251 = vpop.xlane.xlu0 %250
        %v252 = vsel %vm248, %v233, 0.0
        %253 = vadd.xlane.f32.xlu0 %v252
        %v254 = vpop.xlane.xlu0 %253
        %v255 = vsel %vm248, %v234, 0.0
        %256 = vadd.xlane.f32.xlu0 %v255
        %v257 = vpop.xlane.xlu0 %256
        %v258 = vsel %vm248, %v235, 0.0
        %259 = vadd.xlane.f32.xlu0 %v258
        %v260 = vpop.xlane.xlu0 %259
        %v261 = vsel %vm248, %v236, 0.0
        %262 = vadd.xlane.f32.xlu0 %v261
        %v263 = vpop.xlane.xlu0 %262
        %v264 = vsel %vm248, %v237, 0.0
        %265 = vadd.xlane.f32.xlu0 %v264
        %v266 = vpop.xlane.xlu0 %265
        %v267 = vsel %vm248, %v238, 0.0
        %268 = vadd.xlane.f32.xlu0 %v267
        %v269 = vpop.xlane.xlu0 %268
        %v270 = vsel %vm248, %v239, 0.0
        %271 = vadd.xlane.f32.xlu0 %v270
        %v272 = vpop.xlane.xlu0 %271
        %v273 = vsel %vm248, %v240, 0.0
        %274 = vadd.xlane.f32.xlu0 %v273
        %v275 = vpop.xlane.xlu0 %274
        %v276 = vsel %vm248, %v241, 0.0
        %277 = vadd.xlane.f32.xlu0 %v276
        %v278 = vpop.xlane.xlu0 %277
        %v279 = vsel %vm248, %v242, 0.0
        %280 = vadd.xlane.f32.xlu0 %v279
        %v281 = vpop.xlane.xlu0 %280
        %v282 = vsel %vm248, %v243, 0.0
        %283 = vadd.xlane.f32.xlu0 %v282
        %v284 = vpop.xlane.xlu0 %283
        %v285 = vsel %vm248, %v244, 0.0
        %286 = vadd.xlane.f32.xlu0 %v285
        %v287 = vpop.xlane.xlu0 %286
        %v288 = vsel %vm248, %v245, 0.0
        %289 = vadd.xlane.f32.xlu0 %v288
        %v290 = vpop.xlane.xlu0 %289
        %v291 = vsel %vm248, %v246, 0.0
        %292 = vadd.xlane.f32.xlu0 %v291
        %v293 = vpop.xlane.xlu0 %292
        %v294 = vsel %vm248, %v247, 0.0
        %295 = vadd.xlane.f32.xlu0 %v294
        %v296 = vpop.xlane.xlu0 %295
        %v297 = vmul.f32 %v232, %v232
        %v298 = vmul.f32 %v233, %v233
        %v299 = vmul.f32 %v234, %v234
        %v300 = vmul.f32 %v235, %v235
        %v301 = vmul.f32 %v236, %v236
        %v302 = vmul.f32 %v237, %v237
        %v303 = vmul.f32 %v238, %v238
        %v304 = vmul.f32 %v239, %v239
        %v305 = vmul.f32 %v240, %v240
        %v306 = vmul.f32 %v241, %v241
        %v307 = vmul.f32 %v242, %v242
        %v308 = vmul.f32 %v243, %v243
        %v309 = vmul.f32 %v244, %v244
        %v310 = vmul.f32 %v245, %v245
        %v311 = vmul.f32 %v246, %v246
        %v312 = vmul.f32 %v247, %v247
        %v313 = vsel %vm248, %v297, 0.0
        %314 = vadd.xlane.f32.xlu0 %v313
        %v315 = vpop.xlane.xlu0 %314
        %v316 = vsel %vm248, %v298, 0.0
        %317 = vadd.xlane.f32.xlu0 %v316
        %v318 = vpop.xlane.xlu0 %317
        %v319 = vsel %vm248, %v299, 0.0
        %320 = vadd.xlane.f32.xlu0 %v319
        %v321 = vpop.xlane.xlu0 %320
        %v322 = vsel %vm248, %v300, 0.0
        %323 = vadd.xlane.f32.xlu0 %v322
        %v324 = vpop.xlane.xlu0 %323
        %v325 = vsel %vm248, %v301, 0.0
        %326 = vadd.xlane.f32.xlu0 %v325
        %v327 = vpop.xlane.xlu0 %326
        %v328 = vsel %vm248, %v302, 0.0
        %329 = vadd.xlane.f32.xlu0 %v328
        %v330 = vpop.xlane.xlu0 %329
        %v331 = vsel %vm248, %v303, 0.0
        %332 = vadd.xlane.f32.xlu0 %v331
        %v333 = vpop.xlane.xlu0 %332
        %v334 = vsel %vm248, %v304, 0.0
        %335 = vadd.xlane.f32.xlu0 %v334
        %v336 = vpop.xlane.xlu0 %335
        %v337 = vsel %vm248, %v305, 0.0
        %338 = vadd.xlane.f32.xlu0 %v337
        %v339 = vpop.xlane.xlu0 %338
        %v340 = vsel %vm248, %v306, 0.0
        %341 = vadd.xlane.f32.xlu0 %v340
        %v342 = vpop.xlane.xlu0 %341
        %v343 = vsel %vm248, %v307, 0.0
        %344 = vadd.xlane.f32.xlu0 %v343
        %v345 = vpop.xlane.xlu0 %344
        %v346 = vsel %vm248, %v308, 0.0
        %347 = vadd.xlane.f32.xlu0 %v346
        %v348 = vpop.xlane.xlu0 %347
        %v349 = vsel %vm248, %v309, 0.0
        %350 = vadd.xlane.f32.xlu0 %v349
        %v351 = vpop.xlane.xlu0 %350
        %v352 = vsel %vm248, %v310, 0.0
        %353 = vadd.xlane.f32.xlu0 %v352
        %v354 = vpop.xlane.xlu0 %353
        %v355 = vsel %vm248, %v311, 0.0
        %356 = vadd.xlane.f32.xlu0 %v355
        %v357 = vpop.xlane.xlu0 %356
        %v358 = vsel %vm248, %v312, 0.0
        %359 = vadd.xlane.f32.xlu0 %v358
        %v360 = vpop.xlane.xlu0 %359
        %v361 = vmul.f32 %v251, 0.03125
        %v362 = vmul.f32 %v254, 0.03125
        %v363 = vmul.f32 %v257, 0.03125
        %v364 = vmul.f32 %v260, 0.03125
        %v365 = vmul.f32 %v263, 0.03125
        %v366 = vmul.f32 %v266, 0.03125
        %v367 = vmul.f32 %v269, 0.03125
        %v368 = vmul.f32 %v272, 0.03125
        %v369 = vmul.f32 %v275, 0.03125
        %v370 = vmul.f32 %v278, 0.03125
        %v371 = vmul.f32 %v281, 0.03125
        %v372 = vmul.f32 %v284, 0.03125
        %v373 = vmul.f32 %v287, 0.03125
        %v374 = vmul.f32 %v290, 0.03125
        %v375 = vmul.f32 %v293, 0.03125
        %v376 = vmul.f32 %v296, 0.03125
        %v377 = vmul.f32 %v315, 0.03125
        %v378 = vmul.f32 %v318, 0.03125
        %v379 = vmul.f32 %v321, 0.03125
        %v380 = vmul.f32 %v324, 0.03125
        %v381 = vmul.f32 %v327, 0.03125
        %v382 = vmul.f32 %v330, 0.03125
        %v383 = vmul.f32 %v333, 0.03125
        %v384 = vmul.f32 %v336, 0.03125
        %v385 = vmul.f32 %v339, 0.03125
        %v386 = vmul.f32 %v342, 0.03125
        %v387 = vmul.f32 %v345, 0.03125
        %v388 = vmul.f32 %v348, 0.03125
        %v389 = vmul.f32 %v351, 0.03125
        %v390 = vmul.f32 %v354, 0.03125
        %v391 = vmul.f32 %v357, 0.03125
        %v392 = vmul.f32 %v360, 0.03125
        %v393 = vmul.f32 %v361, %v361
        %v394 = vmul.f32 %v362, %v362
        %v395 = vmul.f32 %v363, %v363
        %v396 = vmul.f32 %v364, %v364
        %v397 = vmul.f32 %v365, %v365
        %v398 = vmul.f32 %v366, %v366
        %v399 = vmul.f32 %v367, %v367
        %v400 = vmul.f32 %v368, %v368
        %v401 = vmul.f32 %v369, %v369
        %v402 = vmul.f32 %v370, %v370
        %v403 = vmul.f32 %v371, %v371
        %v404 = vmul.f32 %v372, %v372
        %v405 = vmul.f32 %v373, %v373
        %v406 = vmul.f32 %v374, %v374
        %v407 = vmul.f32 %v375, %v375
        %v408 = vmul.f32 %v376, %v376
        %v409 = vsub.f32 %v377, %v393
        %v410 = vsub.f32 %v378, %v394
        %v411 = vsub.f32 %v379, %v395
        %v412 = vsub.f32 %v380, %v396
        %v413 = vsub.f32 %v381, %v397
        %v414 = vsub.f32 %v382, %v398
        %v415 = vsub.f32 %v383, %v399
        %v416 = vsub.f32 %v384, %v400
        %v417 = vsub.f32 %v385, %v401
        %v418 = vsub.f32 %v386, %v402
        %v419 = vsub.f32 %v387, %v403
        %v420 = vsub.f32 %v388, %v404
        %v421 = vsub.f32 %v389, %v405
        %v422 = vsub.f32 %v390, %v406
        %v423 = vsub.f32 %v391, %v407
        %v424 = vsub.f32 %v392, %v408
        %v425 = vmax.f32 %v409, 0.0
        %v426 = vmax.f32 %v410, 0.0
        %v427 = vmax.f32 %v411, 0.0
        %v428 = vmax.f32 %v412, 0.0
        %v429 = vmax.f32 %v413, 0.0
        %v430 = vmax.f32 %v414, 0.0
        %v431 = vmax.f32 %v415, 0.0
        %v432 = vmax.f32 %v416, 0.0
        %v433 = vmax.f32 %v417, 0.0
        %v434 = vmax.f32 %v418, 0.0
        %v435 = vmax.f32 %v419, 0.0
        %v436 = vmax.f32 %v420, 0.0
        %v437 = vmax.f32 %v421, 0.0
        %v438 = vmax.f32 %v422, 0.0
        %v439 = vmax.f32 %v423, 0.0
        %v440 = vmax.f32 %v424, 0.0
        %v441 = vsub.f32 %v232, %v361
        %v442 = vsub.f32 %v233, %v362
        %v443 = vsub.f32 %v234, %v363
        %v444 = vsub.f32 %v235, %v364
        %v445 = vsub.f32 %v236, %v365
        %v446 = vsub.f32 %v237, %v366
        %v447 = vsub.f32 %v238, %v367
        %v448 = vsub.f32 %v239, %v368
        %v449 = vsub.f32 %v240, %v369
        %v450 = vsub.f32 %v241, %v370
        %v451 = vsub.f32 %v242, %v371
        %v452 = vsub.f32 %v243, %v372
        %v453 = vsub.f32 %v244, %v373
        %v454 = vsub.f32 %v245, %v374
        %v455 = vsub.f32 %v246, %v375
        %v456 = vsub.f32 %v247, %v376
        %v457 = vadd.f32 %v425, 1e-05
        %v458 = vadd.f32 %v426, 1e-05
        %v459 = vadd.f32 %v427, 1e-05
        %v460 = vadd.f32 %v428, 1e-05
        %v461 = vadd.f32 %v429, 1e-05
        %v462 = vadd.f32 %v430, 1e-05
        %v463 = vadd.f32 %v431, 1e-05
        %v464 = vadd.f32 %v432, 1e-05
        %v465 = vadd.f32 %v433, 1e-05
        %v466 = vadd.f32 %v434, 1e-05
        %v467 = vadd.f32 %v435, 1e-05
        %v468 = vadd.f32 %v436, 1e-05
        %v469 = vadd.f32 %v437, 1e-05
        %v470 = vadd.f32 %v438, 1e-05
        %v471 = vadd.f32 %v439, 1e-05
        %v472 = vadd.f32 %v440, 1e-05
        %v473 = vrsqrt.pop %v457
        %v474 = vrsqrt.pop %v458
        %v475 = vrsqrt.pop %v459
        %v476 = vrsqrt.pop %v460
        %v477 = vrsqrt.pop %v461
        %v478 = vrsqrt.pop %v462
        %v479 = vrsqrt.pop %v463
        %v480 = vrsqrt.pop %v464
        %v481 = vrsqrt.pop %v465
        %v482 = vrsqrt.pop %v466
        %v483 = vrsqrt.pop %v467
        %v484 = vrsqrt.pop %v468
        %v485 = vrsqrt.pop %v469
        %v486 = vrsqrt.pop %v470
        %v487 = vrsqrt.pop %v471
        %v488 = vrsqrt.pop %v472
        %v489 = vmul.f32 %v441, %v473
        %v490 = vmul.f32 %v442, %v474
        %v491 = vmul.f32 %v443, %v475
        %v492 = vmul.f32 %v444, %v476
        %v493 = vmul.f32 %v445, %v477
        %v494 = vmul.f32 %v446, %v478
        %v495 = vmul.f32 %v447, %v479
        %v496 = vmul.f32 %v448, %v480
        %v497 = vmul.f32 %v449, %v481
        %v498 = vmul.f32 %v450, %v482
        %v499 = vmul.f32 %v451, %v483
        %v500 = vmul.f32 %v452, %v484
        %v501 = vmul.f32 %v453, %v485
        %v502 = vmul.f32 %v454, %v486
        %v503 = vmul.f32 %v455, %v487
        %v504 = vmul.f32 %v456, %v488
        %v505 = vld [vmem:[%s1] sm:$0x1]
        %v507 = vlaneseq
        %v508 = vshrl.u32 %v507, 7
        %v509 = vsub.s32 0, %v508
        %v510 = vrot.slane %v505, %v509
        %v512 = vmul.f32 %v489, %v510
        %v513 = vmul.f32 %v490, %v510
        %v514 = vmul.f32 %v491, %v510
        %v515 = vmul.f32 %v492, %v510
        %v516 = vmul.f32 %v493, %v510
        %v517 = vmul.f32 %v494, %v510
        %v518 = vmul.f32 %v495, %v510
        %v519 = vmul.f32 %v496, %v510
        %v520 = vmul.f32 %v497, %v510
        %v521 = vmul.f32 %v498, %v510
        %v522 = vmul.f32 %v499, %v510
        %v523 = vmul.f32 %v500, %v510
        %v524 = vmul.f32 %v501, %v510
        %v525 = vmul.f32 %v502, %v510
        %v526 = vmul.f32 %v503, %v510
        %v527 = vmul.f32 %v504, %v510
        %v528 = vld [vmem:[%s2] sm:$0x1]
        %v530 = vlaneseq
        %v531 = vshrl.u32 %v530, 7
        %v532 = vsub.s32 0, %v531
        %v533 = vrot.slane %v528, %v532
        %v535 = vadd.f32 %v512, %v533
        %v536 = vadd.f32 %v513, %v533
        %v537 = vadd.f32 %v514, %v533
        %v538 = vadd.f32 %v515, %v533
        %v539 = vadd.f32 %v516, %v533
        %v540 = vadd.f32 %v517, %v533
        %v541 = vadd.f32 %v518, %v533
        %v542 = vadd.f32 %v519, %v533
        %v543 = vadd.f32 %v520, %v533
        %v544 = vadd.f32 %v521, %v533
        %v545 = vadd.f32 %v522, %v533
        %v546 = vadd.f32 %v523, %v533
        %v547 = vadd.f32 %v524, %v533
        %v548 = vadd.f32 %v525, %v533
        %v549 = vadd.f32 %v526, %v533
        %v550 = vadd.f32 %v527, %v533
        %567 = vrot.lane.b32.xlu0 %v297, 96
        %v568 = vpop.permute.xlu0 %567
        %569 = vrot.lane.b32.xlu0 %v298, 96
        %v570 = vpop.permute.xlu0 %569
        %571 = vrot.lane.b32.xlu0 %v299, 96
        %v572 = vpop.permute.xlu0 %571
        %573 = vrot.lane.b32.xlu0 %v300, 96
        %v574 = vpop.permute.xlu0 %573
        %575 = vrot.lane.b32.xlu0 %v301, 96
        %v576 = vpop.permute.xlu0 %575
        %577 = vrot.lane.b32.xlu0 %v302, 96
        %v578 = vpop.permute.xlu0 %577
        %579 = vrot.lane.b32.xlu0 %v303, 96
        %v580 = vpop.permute.xlu0 %579
        %581 = vrot.lane.b32.xlu0 %v304, 96
        %v582 = vpop.permute.xlu0 %581
        %583 = vrot.lane.b32.xlu0 %v305, 96
        %v584 = vpop.permute.xlu0 %583
        %585 = vrot.lane.b32.xlu0 %v306, 96
        %v586 = vpop.permute.xlu0 %585
        %587 = vrot.lane.b32.xlu0 %v307, 96
        %v588 = vpop.permute.xlu0 %587
        %589 = vrot.lane.b32.xlu0 %v308, 96
        %v590 = vpop.permute.xlu0 %589
        %591 = vrot.lane.b32.xlu0 %v309, 96
        %v592 = vpop.permute.xlu0 %591
        %593 = vrot.lane.b32.xlu0 %v310, 96
        %v594 = vpop.permute.xlu0 %593
        %595 = vrot.lane.b32.xlu0 %v311, 96
        %v596 = vpop.permute.xlu0 %595
        %597 = vrot.lane.b32.xlu0 %v312, 96
        %v598 = vpop.permute.xlu0 %597
        %vm615 = vcmask 785408
        %v616 = vsel %vm615, %v568, 0.0
        %617 = vadd.xlane.f32.xlu0 %v616
        %v618 = vpop.xlane.xlu0 %617
        %v619 = vsel %vm615, %v570, 0.0
        %620 = vadd.xlane.f32.xlu0 %v619
        %v621 = vpop.xlane.xlu0 %620
        %v622 = vsel %vm615, %v572, 0.0
        %623 = vadd.xlane.f32.xlu0 %v622
        %v624 = vpop.xlane.xlu0 %623
        %v625 = vsel %vm615, %v574, 0.0
        %626 = vadd.xlane.f32.xlu0 %v625
        %v627 = vpop.xlane.xlu0 %626
        %v628 = vsel %vm615, %v576, 0.0
        %629 = vadd.xlane.f32.xlu0 %v628
        %v630 = vpop.xlane.xlu0 %629
        %v631 = vsel %vm615, %v578, 0.0
        %632 = vadd.xlane.f32.xlu0 %v631
        %v633 = vpop.xlane.xlu0 %632
        %v634 = vsel %vm615, %v580, 0.0
        %635 = vadd.xlane.f32.xlu0 %v634
        %v636 = vpop.xlane.xlu0 %635
        %v637 = vsel %vm615, %v582, 0.0
        %638 = vadd.xlane.f32.xlu0 %v637
        %v639 = vpop.xlane.xlu0 %638
        %v640 = vsel %vm615, %v584, 0.0
        %641 = vadd.xlane.f32.xlu0 %v640
        %v642 = vpop.xlane.xlu0 %641
        %v643 = vsel %vm615, %v586, 0.0
        %644 = vadd.xlane.f32.xlu0 %v643
        %v645 = vpop.xlane.xlu0 %644
        %v646 = vsel %vm615, %v588, 0.0
        %647 = vadd.xlane.f32.xlu0 %v646
        %v648 = vpop.xlane.xlu0 %647
        %v649 = vsel %vm615, %v590, 0.0
        %650 = vadd.xlane.f32.xlu0 %v649
        %v651 = vpop.xlane.xlu0 %650
        %v652 = vsel %vm615, %v592, 0.0
        %653 = vadd.xlane.f32.xlu0 %v652
        %v654 = vpop.xlane.xlu0 %653
        %v655 = vsel %vm615, %v594, 0.0
        %656 = vadd.xlane.f32.xlu0 %v655
        %v657 = vpop.xlane.xlu0 %656
        %v658 = vsel %vm615, %v596, 0.0
        %659 = vadd.xlane.f32.xlu0 %v658
        %v660 = vpop.xlane.xlu0 %659
        %v661 = vsel %vm615, %v598, 0.0
        %662 = vadd.xlane.f32.xlu0 %v661
        %v663 = vpop.xlane.xlu0 %662
        %v664 = vadd.f32 %v618, 1e-08
        %v665 = vadd.f32 %v621, 1e-08
        %v666 = vadd.f32 %v624, 1e-08
        %v667 = vadd.f32 %v627, 1e-08
        %v668 = vadd.f32 %v630, 1e-08
        %v669 = vadd.f32 %v633, 1e-08
        %v670 = vadd.f32 %v636, 1e-08
        %v671 = vadd.f32 %v639, 1e-08
        %v672 = vadd.f32 %v642, 1e-08
        %v673 = vadd.f32 %v645, 1e-08
        %v674 = vadd.f32 %v648, 1e-08
        %v675 = vadd.f32 %v651, 1e-08
        %v676 = vadd.f32 %v654, 1e-08
        %v677 = vadd.f32 %v657, 1e-08
        %v678 = vadd.f32 %v660, 1e-08
        %v679 = vadd.f32 %v663, 1e-08
        %v680 = vrcp.pop 3.0
        %v681 = vmul.f32 %v664, %v680
        %v682 = vmul.f32 %v665, %v680
        %v683 = vmul.f32 %v666, %v680
        %v684 = vmul.f32 %v667, %v680
        %v685 = vmul.f32 %v668, %v680
        %v686 = vmul.f32 %v669, %v680
        %v687 = vmul.f32 %v670, %v680
        %v688 = vmul.f32 %v671, %v680
        %v689 = vmul.f32 %v672, %v680
        %v690 = vmul.f32 %v673, %v680
        %v691 = vmul.f32 %v674, %v680
        %v692 = vmul.f32 %v675, %v680
        %v693 = vmul.f32 %v676, %v680
        %v694 = vmul.f32 %v677, %v680
        %v695 = vmul.f32 %v678, %v680
        %v696 = vmul.f32 %v679, %v680
        %v697 = vrsqrt.pop %v681
        %v698 = vrsqrt.pop %v682
        %v699 = vrsqrt.pop %v683
        %v700 = vrsqrt.pop %v684
        %v701 = vrsqrt.pop %v685
        %v702 = vrsqrt.pop %v686
        %v703 = vrsqrt.pop %v687
        %v704 = vrsqrt.pop %v688
        %v705 = vrsqrt.pop %v689
        %v706 = vrsqrt.pop %v690
        %v707 = vrsqrt.pop %v691
        %v708 = vrsqrt.pop %v692
        %v709 = vrsqrt.pop %v693
        %v710 = vrsqrt.pop %v694
        %v711 = vrsqrt.pop %v695
        %v712 = vrsqrt.pop %v696
        %s713 = sld [smem:[#allocation6]]
        %s714 = sld [smem:[#allocation6 + $0x1]]
        %v715 = vmul.f32 %v232, %v697
        %v716 = vmul.f32 %v233, %v698
        %v717 = vmul.f32 %v234, %v699
        %v718 = vmul.f32 %v235, %v700
        %v719 = vmul.f32 %v236, %v701
        %v720 = vmul.f32 %v237, %v702
        %v721 = vmul.f32 %v238, %v703
        %v722 = vmul.f32 %v239, %v704
        %v723 = vmul.f32 %v240, %v705
        %v724 = vmul.f32 %v241, %v706
        %v725 = vmul.f32 %v242, %v707
        %v726 = vmul.f32 %v243, %v708
        %v727 = vmul.f32 %v244, %v709
        %v728 = vmul.f32 %v245, %v710
        %v729 = vmul.f32 %v246, %v711
        %v730 = vmul.f32 %v247, %v712
        %v731 = vstv %s713
        %v732 = vmul.f32 %v715, %v731
        %v733 = vmul.f32 %v716, %v731
        %v734 = vmul.f32 %v717, %v731
        %v735 = vmul.f32 %v718, %v731
        %v736 = vmul.f32 %v719, %v731
        %v737 = vmul.f32 %v720, %v731
        %v738 = vmul.f32 %v721, %v731
        %v739 = vmul.f32 %v722, %v731
        %v740 = vmul.f32 %v723, %v731
        %v741 = vmul.f32 %v724, %v731
        %v742 = vmul.f32 %v725, %v731
        %v743 = vmul.f32 %v726, %v731
        %v744 = vmul.f32 %v727, %v731
        %v745 = vmul.f32 %v728, %v731
        %v746 = vmul.f32 %v729, %v731
        %v747 = vmul.f32 %v730, %v731
        %v748 = vstv %s714
        %v749 = vadd.f32 %v732, %v748
        %v750 = vadd.f32 %v733, %v748
        %v751 = vadd.f32 %v734, %v748
        %v752 = vadd.f32 %v735, %v748
        %v753 = vadd.f32 %v736, %v748
        %v754 = vadd.f32 %v737, %v748
        %v755 = vadd.f32 %v738, %v748
        %v756 = vadd.f32 %v739, %v748
        %v757 = vadd.f32 %v740, %v748
        %v758 = vadd.f32 %v741, %v748
        %v759 = vadd.f32 %v742, %v748
        %v760 = vadd.f32 %v743, %v748
        %v761 = vadd.f32 %v744, %v748
        %v762 = vadd.f32 %v745, %v748
        %v763 = vadd.f32 %v746, %v748
        %v764 = vadd.f32 %v747, %v748
        %v765 = vsel %vm248, %v535, %v749
        %v766 = vsel %vm248, %v536, %v750
        %v767 = vsel %vm248, %v537, %v751
        %v768 = vsel %vm248, %v538, %v752
        %v769 = vsel %vm248, %v539, %v753
        %v770 = vsel %vm248, %v540, %v754
        %v771 = vsel %vm248, %v541, %v755
        %v772 = vsel %vm248, %v542, %v756
        %v773 = vsel %vm248, %v543, %v757
        %v774 = vsel %vm248, %v544, %v758
        %v775 = vsel %vm248, %v545, %v759
        %v776 = vsel %vm248, %v546, %v760
        %v777 = vsel %vm248, %v547, %v761
        %v778 = vsel %vm248, %v548, %v762
        %v779 = vsel %vm248, %v549, %v763
        %v780 = vsel %vm248, %v550, %v764
        %781 = vst [vmem:[%s229] sm:$0xff] %v765
        %782 = vst [vmem:[%s229 + $0x8] sm:$0xff] %v766
        %783 = vst [vmem:[%s229 + $0x10] sm:$0xff] %v767
        %784 = vst [vmem:[%s229 + $0x18] sm:$0xff] %v768
        %785 = vst [vmem:[%s229 + $0x20] sm:$0xff] %v769
        %786 = vst [vmem:[%s229 + $0x28] sm:$0xff] %v770
        %787 = vst [vmem:[%s229 + $0x30] sm:$0xff] %v771
        %788 = vst [vmem:[%s229 + $0x38] sm:$0xff] %v772
        %789 = vst [vmem:[%s229 + $0x40] sm:$0xff] %v773
        %790 = vst [vmem:[%s229 + $0x48] sm:$0xff] %v774
        %791 = vst [vmem:[%s229 + $0x50] sm:$0xff] %v775
        %792 = vst [vmem:[%s229 + $0x58] sm:$0xff] %v776
        %793 = vst [vmem:[%s229 + $0x60] sm:$0xff] %v777
        %794 = vst [vmem:[%s229 + $0x68] sm:$0xff] %v778
        %795 = vst [vmem:[%s229 + $0x70] sm:$0xff] %v779
        %796 = vst [vmem:[%s229 + $0x78] sm:$0xff] %v780
        %s797 = sand.u32 %s119, 1
        %s798 = scalar_lea.sflag [#allocation4], %s797
        %s799 = sand.u32 %s119, 1
        %s800 = smul.addr %s799, 128
        %s801 = scalar_lea.vmem [#allocation7], %s800
        // Predicated region
        $region45: #{tpu_custom_call.1} parent=35 // pred_check
          %p802 = pneg %p129
        $region46: #{tpu_custom_call.1} parent=35 // pred_check_branch
          %804 = sbr.rel (%p802) target = $region48
        $region47: #{tpu_custom_call.1} parent=35 // pred_region
          %s805 = smul.u32 16, %s22
          %s807 = ssub.s32 2048, 2048
          %808 = vsyncadd %s798, %s807
          %s809 = smul.addr %s805, 128
          %s810 = scalar_lea.hbm %s4, %s809
          %s811 = sshll.u32 %s801, 4
          %s812 = int_to_ptr.vmem [resolvable:$true] %s811
          %817 = dma.vmem_to_hbm [thread:$0]  %s812, 2048, %s810, %s798, 128, 128, 8
        $region48: #{tpu_custom_call.1} parent=35 // pred_fallthru
          _
      $region36: #{tpu_custom_call.1} parent=5 // pred_fallthru
        _
      %p818 = scmp.le.s32.totalorder 2, %s17
      // Predicated region
      $region49: #{tpu_custom_call.1} parent=5 // pred_check
        %p819 = pneg %p818
      $region50: #{tpu_custom_call.1} parent=5 // pred_check_branch
        %821 = sbr.rel (%p819) target = $region52
      $region51: #{tpu_custom_call.1} parent=5 // pred_region
        %s822 = ssub.s32 %s17, 2
        // Predicated region
        $region53: #{tpu_custom_call.1} parent=51 // pred_check
          %p823 = pneg %p135
        $region54: #{tpu_custom_call.1} parent=51 // pred_check_branch
          %825 = sbr.rel (%p823) target = $region56
        $region55: #{tpu_custom_call.1} parent=51 // pred_region
          %s826 = sand.u32 %s120, 1
          %s827 = scalar_lea.sflag [#allocation4], %s826
          %s828 = sand.u32 %s120, 1
          %s829 = smul.addr %s828, 128
          %s830 = scalar_lea.vmem [#allocation7], %s829
          %831 = dma.done %s827, 2048
        $region56: #{tpu_custom_call.1} parent=51 // pred_fallthru
          _
      $region52: #{tpu_custom_call.1} parent=5 // pred_fallthru
        _
    $region6: #{tpu_custom_call.1} parent=1 // loop_footer
      %s21 = sadd.s32 1, %s17
    $region7: #{tpu_custom_call.1} parent=1 // loop_footer_branch
      %16 = sbr.rel target = $region3
    $region8: #{tpu_custom_call.1} parent=1 // loop_exit
      _
    %832 = vsyncpa [#allocation3], 1
    %s833 = scalar_lea.sflag [#allocation3], 1
    %834 = vsyncpa %s833, 1
    %835 = vsyncpa [#allocation4], 1
    %s836 = scalar_lea.sflag [#allocation4], 1
    %837 = vsyncpa %s836, 1
    %838 = vsyncpa [#allocation5], 1
    %s839 = scalar_lea.sflag [#allocation5], 1
    %840 = vsyncpa %s839, 1

</llo_original>
